<compile_context>
chip_gen: v5e
topology: v5e:2x2
jax: 0.10.0
libtpu: 0.0.40
codegen_flags: <defaults>
</compile_context>

<pallas_src>
import functools

import jax
import jax.numpy as jnp
from jax.experimental import pallas as pl
from jax.experimental.pallas import tpu as pltpu


def _vmem_limit_bytes():
    # Raise the scoped-VMEM limit toward physical capacity (defaults are far below
    # physical on v5e/v6e).  Fall back to the compiler default if unqueryable.
    try:
        return int(pltpu.get_tpu_info().vmem_capacity_bytes * 3 // 4)
    except Exception:
        return None


def _pick_batch_block(batch, rows_per_batch, min_rows=128, max_rows=512):
    # Fold several batch elements into one grid step (per-step overhead ~0.35us;
    # tiny per-batch matmuls are otherwise launch-bound).  Grow the block until it
    # covers >= min_rows sublane rows (fills the MXU M dimension) but keep >= 2
    # grid steps once that is met so v7x's two TensorCores both get work.
    best = 1
    for d in range(1, batch + 1):
        if batch % d:
            continue
        if d * rows_per_batch > max_rows:
            break
        best = d
        if d * rows_per_batch >= min_rows and batch // d >= 2:
            break
    return best


# ----------------------------------------------------------------------------
# Attention layer kernel (one block of batch elements per grid step).
# ----------------------------------------------------------------------------
def _attention_layer_kernel(q_ref, kv_ref,
                            wq_ref, bq_ref, wk_ref, bk_ref,
                            wv_ref, bv_ref, wo_ref, bo_ref,
                            o_ref):
    bb, lq, d_model = q_ref.shape
    _, lk, _ = kv_ref.shape

    # Fold the batch block into the sublane dim -> single 2-D matmuls for the
    # projections.  Inputs stay in their native dtype; MXU accumulates in f32.
    q2 = q_ref[...].reshape(bb * lq, d_model)
    kv2 = kv_ref[...].reshape(bb * lk, d_model)

    qp = jnp.dot(q2, wq_ref[...], preferred_element_type=jnp.float32) + bq_ref[...]
    kp = jnp.dot(kv2, wk_ref[...], preferred_element_type=jnp.float32) + bk_ref[...]
    vp = jnp.dot(kv2, wv_ref[...], preferred_element_type=jnp.float32) + bv_ref[...]

    d_k = qp.shape[-1]
    d_v = vp.shape[-1]
    qp = qp.reshape(bb, lq, d_k)
    kp = kp.reshape(bb, lk, d_k)
    vp = vp.reshape(bb, lk, d_v)

    # scores[b, q, k] = sum_i qp[b, q, i] * kp[b, k, i]   -- unscaled, as in torch.
    # Contract on the last axes directly: no materialized transpose.
    scores = jax.lax.dot_general(
        qp, kp,
        dimension_numbers=(((2,), (2,)), ((0,), (0,))),
        preferred_element_type=jnp.float32)                    # (bb, lq, lk)

    # softmax over the key axis, f32 statistics.  Exact division (approximate
    # reciprocal previously broke tolerance after compounding through layers).
    m = jnp.max(scores, axis=-1, keepdims=True)
    e = jnp.exp(scores - m)
    p = e / jnp.sum(e, axis=-1, keepdims=True)
    # TODO(synk): nn.Dropout is identity in eval mode; training-time mask not implemented.

    ctx = jax.lax.dot_general(
        p, vp,
        dimension_numbers=(((2,), (1,)), ((0,), (0,))),
        preferred_element_type=jnp.float32)                    # (bb, lq, d_v)

    out = jnp.dot(ctx.reshape(bb * lq, d_v), wo_ref[...],
                  preferred_element_type=jnp.float32) + bo_ref[...]
    o_ref[...] = out.reshape(o_ref.shape).astype(o_ref.dtype)


def attention_layer(x, enc, params, *, batch_block=None):
    """One decoder layer (modeled as cross-attention block). params = (wq,bq,...,wo,bo);
    weights stored (in, out), biases (1, out)."""
    wq, bq, wk, bk, wv, bv, wo, bo = params
    B, Lq, d_model = x.shape
    _, Lk, _ = enc.shape
    d_k = wq.shape[1]
    d_v = wv.shape[1]

    if batch_block is None:
        batch_block = _pick_batch_block(B, max(Lq, Lk))
    n_blocks = B // batch_block

    def const_spec(shape):
        return pl.BlockSpec(shape, lambda b: (0,) * len(shape))

    grid_spec = pltpu.PrefetchScalarGridSpec(
        num_scalar_prefetch=0,
        grid=(n_blocks,),
        in_specs=[
            pl.BlockSpec((batch_block, Lq, d_model), lambda b: (b, 0, 0)),   # x
            pl.BlockSpec((batch_block, Lk, d_model), lambda b: (b, 0, 0)),   # encoder_output
            const_spec(wq.shape), const_spec(bq.shape),
            const_spec(wk.shape), const_spec(bk.shape),
            const_spec(wv.shape), const_spec(bv.shape),
            const_spec(wo.shape), const_spec(bo.shape),
        ],
        out_specs=pl.BlockSpec((batch_block, Lq, d_model), lambda b: (b, 0, 0)),
    )

    itemsize = x.dtype.itemsize
    flops = 2 * B * (Lq * d_model * d_k + Lk * d_model * d_k + Lk * d_model * d_v
                     + Lq * Lk * d_k + Lq * Lk * d_v + Lq * d_v * d_model)
    bytes_accessed = ((x.size + enc.size + x.size) * itemsize
                      + sum(int(p.size) * p.dtype.itemsize for p in params))
    cost = pl.CostEstimate(flops=int(flops),
                           transcendentals=int(B * Lq * Lk),
                           bytes_accessed=int(bytes_accessed))

    return pl.pallas_call(
        _attention_layer_kernel,
        out_shape=jax.ShapeDtypeStruct((B, Lq, d_model), x.dtype),
        grid_spec=grid_spec,
        compiler_params=pltpu.CompilerParams(
            dimension_semantics=("parallel",),
            vmem_limit_bytes=_vmem_limit_bytes()),
        cost_estimate=cost,
    )(x, enc, wq, bq, wk, bk, wv, bv, wo, bo)


# ----------------------------------------------------------------------------
# Custom LayerNorm kernel:  gamma * (x - mean) / (std + eps) + beta
# with torch-style Bessel-corrected std (divide by F-1).
# ----------------------------------------------------------------------------
def _layernorm_kernel(eps, x_ref, gamma_ref, beta_ref, o_ref):
    x = x_ref[...].astype(jnp.float32)                 # (bb, L, F)
    f = x.shape[-1]
    mean = jnp.mean(x, axis=-1, keepdims=True)
    d = x - mean
    var = jnp.sum(d * d, axis=-1, keepdims=True) * (1.0 / (f - 1))   # unbiased
    std = jnp.sqrt(var)
    o_ref[...] = (gamma_ref[...] * (d / (std + eps)) + beta_ref[...]).astype(o_ref.dtype)


def layer_norm(x, gamma, beta, *, eps=1e-6, batch_block=None):
    B, L, F = x.shape
    if batch_block is None:
        batch_block = _pick_batch_block(B, L)
    n_blocks = B // batch_block
    gamma2 = gamma.reshape(1, F)
    beta2 = beta.reshape(1, F)

    grid_spec = pltpu.PrefetchScalarGridSpec(
        num_scalar_prefetch=0,
        grid=(n_blocks,),
        in_specs=[
            pl.BlockSpec((batch_block, L, F), lambda b: (b, 0, 0)),
            pl.BlockSpec((1, F), lambda b: (0, 0)),
            pl.BlockSpec((1, F), lambda b: (0, 0)),
        ],
        out_specs=pl.BlockSpec((batch_block, L, F), lambda b: (b, 0, 0)),
    )

    cost = pl.CostEstimate(flops=int(6 * B * L * F),
                           transcendentals=int(2 * B * L),
                           bytes_accessed=int(2 * x.size * x.dtype.itemsize
                                              + 2 * F * gamma.dtype.itemsize))

    return pl.pallas_call(
        functools.partial(_layernorm_kernel, float(eps)),
        out_shape=jax.ShapeDtypeStruct(x.shape, x.dtype),
        grid_spec=grid_spec,
        compiler_params=pltpu.CompilerParams(
            dimension_semantics=("parallel",),
            vmem_limit_bytes=_vmem_limit_bytes()),
        cost_estimate=cost,
    )(x, gamma2, beta2)


# ----------------------------------------------------------------------------
# Decoder forward: stacked layers + final custom LayerNorm.
# ----------------------------------------------------------------------------
def decoder_forward(x, encoder_output, src_mask, tgt_mask, layer_params, norm_params, *, eps=1e-6):
    # TODO(synk): masks are not consumed by the modeled (injected) layer type.
    del src_mask, tgt_mask
    for params in layer_params:
        x = attention_layer(x, encoder_output, params)
    gamma, beta = norm_params
    return layer_norm(x, gamma, beta, eps=eps)


# ----------------------------------------------------------------------------
# Pure-JAX reference.
# ----------------------------------------------------------------------------
def _reference(x, enc, layer_params, norm_params, eps=1e-6):
    for (wq, bq, wk, bk, wv, bv, wo, bo) in layer_params:
        qp = x @ wq + bq[0]
        kp = enc @ wk + bk[0]
        vp = enc @ wv + bv[0]
        s = jnp.einsum('bqd,bkd->bqk', qp, kp)          # unscaled, as in torch
        s = jax.nn.softmax(s, axis=-1)
        x = jnp.einsum('bqk,bkd->bqd', s, vp) @ wo + bo[0]
    gamma, beta = norm_params
    mean = jnp.mean(x, axis=-1, keepdims=True)
    var = jnp.sum((x - mean) ** 2, axis=-1, keepdims=True) / (x.shape[-1] - 1)
    std = jnp.sqrt(var)
    return gamma * (x - mean) / (std + eps) + beta


if __name__ == "__main__":
    # Small, module-consistent shapes; feature dims chosen lane-dense (x128).
    B, Lq, Lk = 2, 8, 8
    d_model, d_k, d_v = 128, 128, 128
    n_layers = 2

    key = jax.random.PRNGKey(0)
    key, kx, ke = jax.random.split(key, 3)
    x = jax.random.normal(kx, (B, Lq, d_model), jnp.float32)
    enc = jax.random.normal(ke, (B, Lk, d_model), jnp.float32)

    def init_linear(k, d_in, d_out):
        kw, kb = jax.random.split(k)
        bound = 1.0 / jnp.sqrt(d_in)
        w = jax.random.uniform(kw, (d_in, d_out), jnp.float32, -bound, bound)
        b = jax.random.uniform(kb, (1, d_out), jnp.float32, -bound, bound)
        return w, b

    layer_params = []
    for _ in range(n_layers):
        key, k1, k2, k3, k4 = jax.random.split(key, 5)
        wq, bq = init_linear(k1, d_model, d_k)
        wk, bk = init_linear(k2, d_model, d_k)
        wv, bv = init_linear(k3, d_model, d_v)
        wo, bo = init_linear(k4, d_v, d_model)
        layer_params.append((wq, bq, wk, bk, wv, bv, wo, bo))

    gamma = jnp.ones((d_model,), jnp.float32)
    beta = jnp.zeros((d_model,), jnp.float32)

    src_mask = jnp.ones((B, Lq, Lk), jnp.float32)   # accepted, unused (see TODO)
    tgt_mask = jnp.ones((B, Lq, Lq), jnp.float32)

    out = decoder_forward(x, enc, src_mask, tgt_mask, layer_params, (gamma, beta))
    out = jax.block_until_ready(out)

    ref = _reference(x, enc, layer_params, (gamma, beta))
    assert out.shape == (B, Lq, d_model)
    max_err = float(jnp.max(jnp.abs(out - ref)))
    # Exact division in softmax/layernorm -> only matmul-accumulation-order noise remains.
    assert jnp.allclose(out, ref, atol=1e-3, rtol=1e-3), \
        f"mismatch vs pure-JAX reference (max abs err {max_err})"

    print("KERNEL_OK")
</pallas_src>

<mosaic_0001>
module attributes {stable_mosaic.version = 11 : i64} {
  func.func @_attention_layer_kernel(%arg0: i32, %arg1: memref<2x8x128xf32, #tpu.memory_space<vmem>>, %arg2: memref<2x8x128xf32, #tpu.memory_space<vmem>>, %arg3: memref<128x128xf32, #tpu.memory_space<vmem>>, %arg4: memref<1x128xf32, #tpu.memory_space<vmem>>, %arg5: memref<128x128xf32, #tpu.memory_space<vmem>>, %arg6: memref<1x128xf32, #tpu.memory_space<vmem>>, %arg7: memref<128x128xf32, #tpu.memory_space<vmem>>, %arg8: memref<1x128xf32, #tpu.memory_space<vmem>>, %arg9: memref<128x128xf32, #tpu.memory_space<vmem>>, %arg10: memref<1x128xf32, #tpu.memory_space<vmem>>, %arg11: memref<2x8x128xf32, #tpu.memory_space<vmem>>) attributes {dimension_semantics = [#tpu.dimension_semantics<parallel>], iteration_bounds = array<i64: 1>, scalar_prefetch = 0 : i64, scratch_operands = 0 : i64, tpu.core_type = #tpu.core_type<tc>, window_params = [{transform_indices = @transform_0, window_bounds = array<i64: 2, 8, 128>}, {transform_indices = @transform_1, window_bounds = array<i64: 2, 8, 128>}, {pipeline_mode = #tpu.pipeline_mode<synchronous>, transform_indices = @transform_2, window_bounds = array<i64: 128, 128>}, {pipeline_mode = #tpu.pipeline_mode<synchronous>, transform_indices = @transform_3, window_bounds = array<i64: 1, 128>}, {pipeline_mode = #tpu.pipeline_mode<synchronous>, transform_indices = @transform_4, window_bounds = array<i64: 128, 128>}, {pipeline_mode = #tpu.pipeline_mode<synchronous>, transform_indices = @transform_5, window_bounds = array<i64: 1, 128>}, {pipeline_mode = #tpu.pipeline_mode<synchronous>, transform_indices = @transform_6, window_bounds = array<i64: 128, 128>}, {pipeline_mode = #tpu.pipeline_mode<synchronous>, transform_indices = @transform_7, window_bounds = array<i64: 1, 128>}, {pipeline_mode = #tpu.pipeline_mode<synchronous>, transform_indices = @transform_8, window_bounds = array<i64: 128, 128>}, {pipeline_mode = #tpu.pipeline_mode<synchronous>, transform_indices = @transform_9, window_bounds = array<i64: 1, 128>}, {transform_indices = @transform_10, window_bounds = array<i64: 2, 8, 128>}]} {
    %c0 = arith.constant 0 : index
    %c0_0 = arith.constant 0 : index
    %c0_1 = arith.constant 0 : index
    %0 = vector.load %arg1[%c0, %c0_0, %c0_1] : memref<2x8x128xf32, #tpu.memory_space<vmem>>, vector<2x8x128xf32>
    %1 = vector.shape_cast %0 : vector<2x8x128xf32> to vector<16x128xf32>
    %c0_2 = arith.constant 0 : index
    %c0_3 = arith.constant 0 : index
    %c0_4 = arith.constant 0 : index
    %2 = vector.load %arg2[%c0_2, %c0_3, %c0_4] : memref<2x8x128xf32, #tpu.memory_space<vmem>>, vector<2x8x128xf32>
    %3 = vector.shape_cast %2 : vector<2x8x128xf32> to vector<16x128xf32>
    %c0_5 = arith.constant 0 : index
    %c0_6 = arith.constant 0 : index
    %4 = vector.load %arg3[%c0_5, %c0_6] : memref<128x128xf32, #tpu.memory_space<vmem>>, vector<128x128xf32>
    %cst = arith.constant dense<0.000000e+00> : vector<16x128xf32>
    %5 = tpu.matmul %1, %4, %cst {dimension_numbers = #tpu.dot_dimension_numbers<[1], [0], [0], [1], [0, 0, 1, 1], [], []>} : vector<16x128xf32>, vector<128x128xf32>, vector<16x128xf32> -> vector<16x128xf32>
    %c0_7 = arith.constant 0 : index
    %c0_8 = arith.constant 0 : index
    %6 = vector.load %arg4[%c0_7, %c0_8] : memref<1x128xf32, #tpu.memory_space<vmem>>, vector<1x128xf32>
    %7 = vector.broadcast %6 : vector<1x128xf32> to vector<16x128xf32>
    %8 = arith.addf %5, %7 : vector<16x128xf32>
    %c0_9 = arith.constant 0 : index
    %c0_10 = arith.constant 0 : index
    %9 = vector.load %arg5[%c0_9, %c0_10] : memref<128x128xf32, #tpu.memory_space<vmem>>, vector<128x128xf32>
    %cst_11 = arith.constant dense<0.000000e+00> : vector<16x128xf32>
    %10 = tpu.matmul %3, %9, %cst_11 {dimension_numbers = #tpu.dot_dimension_numbers<[1], [0], [0], [1], [0, 0, 1, 1], [], []>} : vector<16x128xf32>, vector<128x128xf32>, vector<16x128xf32> -> vector<16x128xf32>
    %c0_12 = arith.constant 0 : index
    %c0_13 = arith.constant 0 : index
    %11 = vector.load %arg6[%c0_12, %c0_13] : memref<1x128xf32, #tpu.memory_space<vmem>>, vector<1x128xf32>
    %12 = vector.broadcast %11 : vector<1x128xf32> to vector<16x128xf32>
    %13 = arith.addf %10, %12 : vector<16x128xf32>
    %c0_14 = arith.constant 0 : index
    %c0_15 = arith.constant 0 : index
    %14 = vector.load %arg7[%c0_14, %c0_15] : memref<128x128xf32, #tpu.memory_space<vmem>>, vector<128x128xf32>
    %cst_16 = arith.constant dense<0.000000e+00> : vector<16x128xf32>
    %15 = tpu.matmul %3, %14, %cst_16 {dimension_numbers = #tpu.dot_dimension_numbers<[1], [0], [0], [1], [0, 0, 1, 1], [], []>} : vector<16x128xf32>, vector<128x128xf32>, vector<16x128xf32> -> vector<16x128xf32>
    %c0_17 = arith.constant 0 : index
    %c0_18 = arith.constant 0 : index
    %16 = vector.load %arg8[%c0_17, %c0_18] : memref<1x128xf32, #tpu.memory_space<vmem>>, vector<1x128xf32>
    %17 = vector.broadcast %16 : vector<1x128xf32> to vector<16x128xf32>
    %18 = arith.addf %15, %17 : vector<16x128xf32>
    %19 = vector.shape_cast %8 : vector<16x128xf32> to vector<2x8x128xf32>
    %20 = vector.shape_cast %13 : vector<16x128xf32> to vector<2x8x128xf32>
    %21 = vector.shape_cast %18 : vector<16x128xf32> to vector<2x8x128xf32>
    %cst_19 = arith.constant dense<0.000000e+00> : vector<2x8x8xf32>
    %22 = tpu.matmul %19, %20, %cst_19 {dimension_numbers = #tpu.dot_dimension_numbers<[2], [2], [1], [1], [0, 0, 0, 1, 1, 1], [0], [0]>} : vector<2x8x128xf32>, vector<2x8x128xf32>, vector<2x8x8xf32> -> vector<2x8x8xf32>
    %cst_20 = arith.constant dense<0xFF800000> : vector<2x8xf32>
    %23 = vector.multi_reduction <maximumf>, %22, %cst_20 [2] : vector<2x8x8xf32> to vector<2x8xf32>
    %24 = vector.shape_cast %23 : vector<2x8xf32> to vector<2x8x1xf32>
    %25 = vector.broadcast %24 : vector<2x8x1xf32> to vector<2x8x8xf32>
    %26 = arith.subf %22, %25 : vector<2x8x8xf32>
    %27 = math.exp %26 : vector<2x8x8xf32>
    %cst_21 = arith.constant dense<0.000000e+00> : vector<2x8xf32>
    %28 = vector.multi_reduction <add>, %27, %cst_21 [2] : vector<2x8x8xf32> to vector<2x8xf32>
    %29 = vector.shape_cast %28 : vector<2x8xf32> to vector<2x8x1xf32>
    %30 = vector.broadcast %29 : vector<2x8x1xf32> to vector<2x8x8xf32>
    %31 = arith.divf %27, %30 : vector<2x8x8xf32>
    %cst_22 = arith.constant dense<0.000000e+00> : vector<2x8x128xf32>
    %32 = tpu.matmul %31, %21, %cst_22 {dimension_numbers = #tpu.dot_dimension_numbers<[2], [1], [1], [2], [0, 0, 0, 1, 1, 2], [0], [0]>} : vector<2x8x8xf32>, vector<2x8x128xf32>, vector<2x8x128xf32> -> vector<2x8x128xf32>
    %33 = vector.shape_cast %32 : vector<2x8x128xf32> to vector<16x128xf32>
    %c0_23 = arith.constant 0 : index
    %c0_24 = arith.constant 0 : index
    %34 = vector.load %arg9[%c0_23, %c0_24] : memref<128x128xf32, #tpu.memory_space<vmem>>, vector<128x128xf32>
    %cst_25 = arith.constant dense<0.000000e+00> : vector<16x128xf32>
    %35 = tpu.matmul %33, %34, %cst_25 {dimension_numbers = #tpu.dot_dimension_numbers<[1], [0], [0], [1], [0, 0, 1, 1], [], []>} : vector<16x128xf32>, vector<128x128xf32>, vector<16x128xf32> -> vector<16x128xf32>
    %c0_26 = arith.constant 0 : index
    %c0_27 = arith.constant 0 : index
    %36 = vector.load %arg10[%c0_26, %c0_27] : memref<1x128xf32, #tpu.memory_space<vmem>>, vector<1x128xf32>
    %37 = vector.broadcast %36 : vector<1x128xf32> to vector<16x128xf32>
    %38 = arith.addf %35, %37 : vector<16x128xf32>
    %39 = vector.shape_cast %38 : vector<16x128xf32> to vector<2x8x128xf32>
    %c0_28 = arith.constant 0 : index
    %c0_29 = arith.constant 0 : index
    %c0_30 = arith.constant 0 : index
    %40 = vector.load %arg11[%c0_28, %c0_29, %c0_30] : memref<2x8x128xf32, #tpu.memory_space<vmem>>, vector<2x8x128xf32>
    tpu.vector_store %arg11[%c0_28, %c0_29, %c0_30], %39 {strides = array<i32>} : memref<2x8x128xf32, #tpu.memory_space<vmem>>, vector<2x8x128xf32>,
    return
  }
  func.func @transform_0(%arg0: i32) -> (i32, i32, i32) {
    %c0_i32 = arith.constant 0 : i32
    %c0_i32_0 = arith.constant 0 : i32
    %c0_i32_1 = arith.constant 0 : i32
    return %arg0, %c0_i32, %c0_i32_0 : i32, i32, i32
  }
  func.func @transform_1(%arg0: i32) -> (i32, i32, i32) {
    %c0_i32 = arith.constant 0 : i32
    %c0_i32_0 = arith.constant 0 : i32
    %c0_i32_1 = arith.constant 0 : i32
    return %arg0, %c0_i32, %c0_i32_0 : i32, i32, i32
  }
  func.func @transform_2(%arg0: i32) -> (i32, i32) {
    %c0_i32 = arith.constant 0 : i32
    %c0_i32_0 = arith.constant 0 : i32
    %c0_i32_1 = arith.constant 0 : i32
    return %c0_i32, %c0_i32_0 : i32, i32
  }
  func.func @transform_3(%arg0: i32) -> (i32, i32) {
    %c0_i32 = arith.constant 0 : i32
    %c0_i32_0 = arith.constant 0 : i32
    %c0_i32_1 = arith.constant 0 : i32
    return %c0_i32, %c0_i32_0 : i32, i32
  }
  func.func @transform_4(%arg0: i32) -> (i32, i32) {
    %c0_i32 = arith.constant 0 : i32
    %c0_i32_0 = arith.constant 0 : i32
    %c0_i32_1 = arith.constant 0 : i32
    return %c0_i32, %c0_i32_0 : i32, i32
  }
  func.func @transform_5(%arg0: i32) -> (i32, i32) {
    %c0_i32 = arith.constant 0 : i32
    %c0_i32_0 = arith.constant 0 : i32
    %c0_i32_1 = arith.constant 0 : i32
    return %c0_i32, %c0_i32_0 : i32, i32
  }
  func.func @transform_6(%arg0: i32) -> (i32, i32) {
    %c0_i32 = arith.constant 0 : i32
    %c0_i32_0 = arith.constant 0 : i32
    %c0_i32_1 = arith.constant 0 : i32
    return %c0_i32, %c0_i32_0 : i32, i32
  }
  func.func @transform_7(%arg0: i32) -> (i32, i32) {
    %c0_i32 = arith.constant 0 : i32
    %c0_i32_0 = arith.constant 0 : i32
    %c0_i32_1 = arith.constant 0 : i32
    return %c0_i32, %c0_i32_0 : i32, i32
  }
  func.func @transform_8(%arg0: i32) -> (i32, i32) {
    %c0_i32 = arith.constant 0 : i32
    %c0_i32_0 = arith.constant 0 : i32
    %c0_i32_1 = arith.constant 0 : i32
    return %c0_i32, %c0_i32_0 : i32, i32
  }
  func.func @transform_9(%arg0: i32) -> (i32, i32) {
    %c0_i32 = arith.constant 0 : i32
    %c0_i32_0 = arith.constant 0 : i32
    %c0_i32_1 = arith.constant 0 : i32
    return %c0_i32, %c0_i32_0 : i32, i32
  }
  func.func @transform_10(%arg0: i32) -> (i32, i32, i32) {
    %c0_i32 = arith.constant 0 : i32
    %c0_i32_0 = arith.constant 0 : i32
    %c0_i32_1 = arith.constant 0 : i32
    return %arg0, %c0_i32, %c0_i32_0 : i32, i32, i32
  }
}

</mosaic_0001>

<llo_original>
// kernel: tpu_custom_call.1
$region0: #{tpu_custom_call.1}
  #allocation0 [shape = 'u32[]', space=smem, size = 0x4, offset = 0x4, fixed_abs, tag = 'smem constant byte address 0x4 - core index']
  #allocation1 [shape = 'u32[72,128]{1,0:T(1,128)}', space=vmem, size = 0x9000, scoped, tag = 'internal scratch']
  %s0 = inlined_call_operand.hbm [shape: f32[2,8,128], index: 0, kind: input, shape index: {}]
  %s1 = inlined_call_operand.hbm [shape: f32[2,8,128], index: 1, kind: input, shape index: {}]
  %s2 = inlined_call_operand.hbm [shape: f32[128,128], index: 2, kind: input, shape index: {}]
  %s3 = inlined_call_operand.vmem [shape: f32[1,128], index: 3, kind: input, shape index: {}]
  %s4 = inlined_call_operand.hbm [shape: f32[128,128], index: 4, kind: input, shape index: {}]
  %s5 = inlined_call_operand.vmem [shape: f32[1,128], index: 5, kind: input, shape index: {}]
  %s6 = inlined_call_operand.hbm [shape: f32[128,128], index: 6, kind: input, shape index: {}]
  %s7 = inlined_call_operand.vmem [shape: f32[1,128], index: 7, kind: input, shape index: {}]
  %s8 = inlined_call_operand.hbm [shape: f32[128,128], index: 8, kind: input, shape index: {}]
  %s9 = inlined_call_operand.vmem [shape: f32[1,128], index: 9, kind: input, shape index: {}]
  %s10 = inlined_call_operand.hbm [shape: f32[2,8,128], index: 10, kind: output, shape index: {}]
  %s11 = sld [smem:[#allocation0]]
  $region74: #{tpu_custom_call.1} parent=0
    _
  %s13 = ssub.s32 1, %s11
  %s14 = scalar_select 0, %s13, %s11
  $region1: #{tpu_custom_call.1} parent=0
    #allocation2 [shape = 'u8[8192]{0}', space=vmem, size = 0x2000, scoped, tag = 'input window, operand 0, single buffered']
    #allocation3 [shape = 's32[1]{0}', space=sflag, size = 0x4, scoped, tag = 'scoped memory for tpu_custom_call.1']
    #allocation4 [shape = 's32[1]{0}', space=sflag, size = 0x4, scoped, tag = 'scoped memory for tpu_custom_call.1']
    #allocation5 [shape = 'u8[8192]{0}', space=vmem, size = 0x2000, scoped, tag = 'input window, operand 1, single buffered']
    #allocation6 [shape = 's32[1]{0}', space=sflag, size = 0x4, scoped, tag = 'scoped memory for tpu_custom_call.1']
    #allocation7 [shape = 'u8[65536]{0}', space=vmem, size = 0x10000, scoped, tag = 'input window, operand 2, single buffered']
    #allocation8 [shape = 'u8[65536]{0}', space=vmem, size = 0x10000, scoped, tag = 'input window, operand 4, single buffered']
    #allocation9 [shape = 's32[1]{0}', space=sflag, size = 0x4, scoped, tag = 'scoped memory for tpu_custom_call.1']
    #allocation10 [shape = 'u8[65536]{0}', space=vmem, size = 0x10000, scoped, tag = 'input window, operand 6, single buffered']
    #allocation11 [shape = 'u8[65536]{0}', space=vmem, size = 0x10000, scoped, tag = 'input window, operand 8, single buffered']
    #allocation12 [shape = 's32[1]{0}', space=sflag, size = 0x4, scoped, tag = 'scoped memory for tpu_custom_call.1']
    #allocation13 [shape = 'u8[8192]{0}', space=vmem, size = 0x2000, scoped, tag = 'output window, operand 0, single buffered']
    %15 = vsyncpa [#allocation3], 0
    %16 = vsyncpa [#allocation6], 0
    %17 = vsyncpa [#allocation9], 0
    %18 = vsyncpa [#allocation12], 0
    %19 = vsyncpa [#allocation4], 0
    // Predicated region
    $region2: #{tpu_custom_call.1} parent=1 // pred_check
      _
    $region3: #{tpu_custom_call.1} parent=1 // pred_check_branch
      %21 = sbr.rel (0) target = $region5
    $region4: #{tpu_custom_call.1} parent=1 // pred_region
      %23 = vsyncadd [#allocation3], 0
      %s24 = sshll.u32 %s0, 4
      %s25 = int_to_ptr.hbm [resolvable:$true] %s24
      %s26 = sshll.u32 [#allocation2], 4
      %s27 = int_to_ptr.vmem [resolvable:$true] %s26
      %32 = dma.hbm_to_vmem [thread:$0]  %s25, 256, %s27, [#allocation3], 128, 128, 8
    $region5: #{tpu_custom_call.1} parent=1 // pred_fallthru
      _
    // Predicated region
    $region6: #{tpu_custom_call.1} parent=1 // pred_check
      _
    $region7: #{tpu_custom_call.1} parent=1 // pred_check_branch
      %34 = sbr.rel (0) target = $region9
    $region8: #{tpu_custom_call.1} parent=1 // pred_region
      %36 = vsyncadd [#allocation6], 0
      %s37 = sshll.u32 %s1, 4
      %s38 = int_to_ptr.hbm [resolvable:$true] %s37
      %s39 = sshll.u32 [#allocation5], 4
      %s40 = int_to_ptr.vmem [resolvable:$true] %s39
      %45 = dma.hbm_to_vmem [thread:$0]  %s38, 256, %s40, [#allocation6], 128, 128, 8
    $region9: #{tpu_custom_call.1} parent=1 // pred_fallthru
      _
    // Predicated region
    $region10: #{tpu_custom_call.1} parent=1 // pred_check
      _
    $region11: #{tpu_custom_call.1} parent=1 // pred_check_branch
      %47 = sbr.rel (0) target = $region13
    $region12: #{tpu_custom_call.1} parent=1 // pred_region
      %49 = vsyncadd [#allocation6], 0
      %s50 = sshll.u32 %s2, 4
      %s51 = int_to_ptr.hbm [resolvable:$true] %s50
      %s52 = sshll.u32 [#allocation7], 4
      %s53 = int_to_ptr.vmem [resolvable:$true] %s52
      %58 = dma.hbm_to_vmem [thread:$0]  %s51, 2048, %s53, [#allocation6], 128, 128, 8
    $region13: #{tpu_custom_call.1} parent=1 // pred_fallthru
      _
    // Predicated region
    $region14: #{tpu_custom_call.1} parent=1 // pred_check
      _
    $region15: #{tpu_custom_call.1} parent=1 // pred_check_branch
      %60 = sbr.rel (0) target = $region17
    $region16: #{tpu_custom_call.1} parent=1 // pred_region
      _
    $region17: #{tpu_custom_call.1} parent=1 // pred_fallthru
      _
    // Predicated region
    $region18: #{tpu_custom_call.1} parent=1 // pred_check
      _
    $region19: #{tpu_custom_call.1} parent=1 // pred_check_branch
      %62 = sbr.rel (0) target = $region21
    $region20: #{tpu_custom_call.1} parent=1 // pred_region
      %64 = vsyncadd [#allocation9], 0
      %s65 = sshll.u32 %s4, 4
      %s66 = int_to_ptr.hbm [resolvable:$true] %s65
      %s67 = sshll.u32 [#allocation8], 4
      %s68 = int_to_ptr.vmem [resolvable:$true] %s67
      %73 = dma.hbm_to_vmem [thread:$0]  %s66, 2048, %s68, [#allocation9], 128, 128, 8
    $region21: #{tpu_custom_call.1} parent=1 // pred_fallthru
      _
    // Predicated region
    $region22: #{tpu_custom_call.1} parent=1 // pred_check
      _
    $region23: #{tpu_custom_call.1} parent=1 // pred_check_branch
      %75 = sbr.rel (0) target = $region25
    $region24: #{tpu_custom_call.1} parent=1 // pred_region
      _
    $region25: #{tpu_custom_call.1} parent=1 // pred_fallthru
      _
    // Predicated region
    $region26: #{tpu_custom_call.1} parent=1 // pred_check
      _
    $region27: #{tpu_custom_call.1} parent=1 // pred_check_branch
      %77 = sbr.rel (0) target = $region29
    $region28: #{tpu_custom_call.1} parent=1 // pred_region
      %79 = vsyncadd [#allocation9], 0
      %s80 = sshll.u32 %s6, 4
      %s81 = int_to_ptr.hbm [resolvable:$true] %s80
      %s82 = sshll.u32 [#allocation10], 4
      %s83 = int_to_ptr.vmem [resolvable:$true] %s82
      %88 = dma.hbm_to_vmem [thread:$0]  %s81, 2048, %s83, [#allocation9], 128, 128, 8
    $region29: #{tpu_custom_call.1} parent=1 // pred_fallthru
      _
    // Predicated region
    $region30: #{tpu_custom_call.1} parent=1 // pred_check
      _
    $region31: #{tpu_custom_call.1} parent=1 // pred_check_branch
      %90 = sbr.rel (0) target = $region33
    $region32: #{tpu_custom_call.1} parent=1 // pred_region
      _
    $region33: #{tpu_custom_call.1} parent=1 // pred_fallthru
      _
    // Predicated region
    $region34: #{tpu_custom_call.1} parent=1 // pred_check
      _
    $region35: #{tpu_custom_call.1} parent=1 // pred_check_branch
      %92 = sbr.rel (0) target = $region37
    $region36: #{tpu_custom_call.1} parent=1 // pred_region
      %94 = vsyncadd [#allocation12], 0
      %s95 = sshll.u32 %s8, 4
      %s96 = int_to_ptr.hbm [resolvable:$true] %s95
      %s97 = sshll.u32 [#allocation11], 4
      %s98 = int_to_ptr.vmem [resolvable:$true] %s97
      %103 = dma.hbm_to_vmem [thread:$0]  %s96, 2048, %s98, [#allocation12], 128, 128, 8
    $region37: #{tpu_custom_call.1} parent=1 // pred_fallthru
      _
    // Predicated region
    $region38: #{tpu_custom_call.1} parent=1 // pred_check
      _
    $region39: #{tpu_custom_call.1} parent=1 // pred_check_branch
      %105 = sbr.rel (0) target = $region41
    $region40: #{tpu_custom_call.1} parent=1 // pred_region
      _
    $region41: #{tpu_custom_call.1} parent=1 // pred_fallthru
      _
    // Predicated region
    $region42: #{tpu_custom_call.1} parent=1 // pred_check
      _
    $region43: #{tpu_custom_call.1} parent=1 // pred_check_branch
      %107 = sbr.rel (0) target = $region45
    $region44: #{tpu_custom_call.1} parent=1 // pred_region
      %109 = dma.done [#allocation3], 256
    $region45: #{tpu_custom_call.1} parent=1 // pred_fallthru
      _
    // Predicated region
    $region46: #{tpu_custom_call.1} parent=1 // pred_check
      _
    $region47: #{tpu_custom_call.1} parent=1 // pred_check_branch
      %111 = sbr.rel (0) target = $region49
    $region48: #{tpu_custom_call.1} parent=1 // pred_region
      %113 = dma.done [#allocation6], 256
    $region49: #{tpu_custom_call.1} parent=1 // pred_fallthru
      _
    // Predicated region
    $region50: #{tpu_custom_call.1} parent=1 // pred_check
      _
    $region51: #{tpu_custom_call.1} parent=1 // pred_check_branch
      %115 = sbr.rel (0) target = $region53
    $region52: #{tpu_custom_call.1} parent=1 // pred_region
      %117 = dma.done [#allocation6], 2048
    $region53: #{tpu_custom_call.1} parent=1 // pred_fallthru
      _
    // Predicated region
    $region54: #{tpu_custom_call.1} parent=1 // pred_check
      _
    $region55: #{tpu_custom_call.1} parent=1 // pred_check_branch
      %119 = sbr.rel (0) target = $region57
    $region56: #{tpu_custom_call.1} parent=1 // pred_region
      %121 = dma.done [#allocation9], 2048
    $region57: #{tpu_custom_call.1} parent=1 // pred_fallthru
      _
    // Predicated region
    $region58: #{tpu_custom_call.1} parent=1 // pred_check
      _
    $region59: #{tpu_custom_call.1} parent=1 // pred_check_branch
      %123 = sbr.rel (0) target = $region61
    $region60: #{tpu_custom_call.1} parent=1 // pred_region
      %125 = dma.done [#allocation9], 2048
    $region61: #{tpu_custom_call.1} parent=1 // pred_fallthru
      _
    // Predicated region
    $region62: #{tpu_custom_call.1} parent=1 // pred_check
      _
    $region63: #{tpu_custom_call.1} parent=1 // pred_check_branch
      %127 = sbr.rel (0) target = $region65
    $region64: #{tpu_custom_call.1} parent=1 // pred_region
      %129 = dma.done [#allocation12], 2048
    $region65: #{tpu_custom_call.1} parent=1 // pred_fallthru
      _
    %v130 = vld [vmem:[#allocation2] sm:$0xff]
    %v131 = vld [vmem:[#allocation2 + $0x8] sm:$0xff]
    %v132 = vld [vmem:[#allocation5] sm:$0xff]
    %v133 = vld [vmem:[#allocation5 + $0x8] sm:$0xff]
    %v134 = vld [vmem:[#allocation7] sm:$0xff]
    %v135 = vld [vmem:[#allocation7 + $0x8] sm:$0xff]
    %v136 = vld [vmem:[#allocation7 + $0x10] sm:$0xff]
    %v137 = vld [vmem:[#allocation7 + $0x18] sm:$0xff]
    %v138 = vld [vmem:[#allocation7 + $0x20] sm:$0xff]
    %v139 = vld [vmem:[#allocation7 + $0x28] sm:$0xff]
    %v140 = vld [vmem:[#allocation7 + $0x30] sm:$0xff]
    %v141 = vld [vmem:[#allocation7 + $0x38] sm:$0xff]
    %v142 = vld [vmem:[#allocation7 + $0x40] sm:$0xff]
    %v143 = vld [vmem:[#allocation7 + $0x48] sm:$0xff]
    %v144 = vld [vmem:[#allocation7 + $0x50] sm:$0xff]
    %v145 = vld [vmem:[#allocation7 + $0x58] sm:$0xff]
    %v146 = vld [vmem:[#allocation7 + $0x60] sm:$0xff]
    %v147 = vld [vmem:[#allocation7 + $0x68] sm:$0xff]
    %v148 = vld [vmem:[#allocation7 + $0x70] sm:$0xff]
    %v149 = vld [vmem:[#allocation7 + $0x78] sm:$0xff]
    %v150 = vld [vmem:[%s3] sm:$0x1]
    %v152 = vperm.slane %v150, 0
    %154 = vmatpush.msra.mxu0 %v149
    %155 = vmatpush.msra.mxu0 %v148
    %156 = vmatpush.msra.mxu0 %v147
    %157 = vmatpush.msra.mxu0 %v146
    %158 = vmatpush.msra.mxu0 %v145
    %159 = vmatpush.msra.mxu0 %v144
    %160 = vmatpush.msra.mxu0 %v143
    %161 = vmatpush.msra.mxu0 %v142
    %162 = vmatpush.msra.mxu0 %v141
    %163 = vmatpush.msra.mxu0 %v140
    %164 = vmatpush.msra.mxu0 %v139
    %165 = vmatpush.msra.mxu0 %v138
    %166 = vmatpush.msra.mxu0 %v137
    %167 = vmatpush.msra.mxu0 %v136
    %168 = vmatpush.msra.mxu0 %v135
    %169 = vmatpush.msra.mxu0 %v134
    %170 = vmatmul.f32.gmra.mxu0 %v130
    %v171 = vpop.f32.mrf.mxu0
    %v172 = vadd.f32 %v152, %v171
    %173 = vmatmul.f32.gmra.mxu0 %v131
    %v174 = vpop.f32.mrf.mxu0
    %v175 = vadd.f32 %v152, %v174
    %176 = vdwg.mxu0
    %v177 = vld [vmem:[#allocation8] sm:$0xff]
    %v178 = vld [vmem:[#allocation8 + $0x8] sm:$0xff]
    %v179 = vld [vmem:[#allocation8 + $0x10] sm:$0xff]
    %v180 = vld [vmem:[#allocation8 + $0x18] sm:$0xff]
    %v181 = vld [vmem:[#allocation8 + $0x20] sm:$0xff]
    %v182 = vld [vmem:[#allocation8 + $0x28] sm:$0xff]
    %v183 = vld [vmem:[#allocation8 + $0x30] sm:$0xff]
    %v184 = vld [vmem:[#allocation8 + $0x38] sm:$0xff]
    %v185 = vld [vmem:[#allocation8 + $0x40] sm:$0xff]
    %v186 = vld [vmem:[#allocation8 + $0x48] sm:$0xff]
    %v187 = vld [vmem:[#allocation8 + $0x50] sm:$0xff]
    %v188 = vld [vmem:[#allocation8 + $0x58] sm:$0xff]
    %v189 = vld [vmem:[#allocation8 + $0x60] sm:$0xff]
    %v190 = vld [vmem:[#allocation8 + $0x68] sm:$0xff]
    %v191 = vld [vmem:[#allocation8 + $0x70] sm:$0xff]
    %v192 = vld [vmem:[#allocation8 + $0x78] sm:$0xff]
    %v193 = vld [vmem:[%s5] sm:$0x1]
    %v195 = vperm.slane %v193, 0
    %197 = vmatpush.msra.mxu0 %v192
    %198 = vmatpush.msra.mxu0 %v191
    %199 = vmatpush.msra.mxu0 %v190
    %200 = vmatpush.msra.mxu0 %v189
    %201 = vmatpush.msra.mxu0 %v188
    %202 = vmatpush.msra.mxu0 %v187
    %203 = vmatpush.msra.mxu0 %v186
    %204 = vmatpush.msra.mxu0 %v185
    %205 = vmatpush.msra.mxu0 %v184
    %206 = vmatpush.msra.mxu0 %v183
    %207 = vmatpush.msra.mxu0 %v182
    %208 = vmatpush.msra.mxu0 %v181
    %209 = vmatpush.msra.mxu0 %v180
    %210 = vmatpush.msra.mxu0 %v179
    %211 = vmatpush.msra.mxu0 %v178
    %212 = vmatpush.msra.mxu0 %v177
    %213 = vmatmul.f32.gmra.mxu0 %v132
    %v214 = vpop.f32.mrf.mxu0
    %v215 = vadd.f32 %v195, %v214
    %216 = vmatmul.f32.gmra.mxu0 %v133
    %v217 = vpop.f32.mrf.mxu0
    %v218 = vadd.f32 %v195, %v217
    %219 = vdwg.mxu0
    %v220 = vld [vmem:[#allocation10] sm:$0xff]
    %v221 = vld [vmem:[#allocation10 + $0x8] sm:$0xff]
    %v222 = vld [vmem:[#allocation10 + $0x10] sm:$0xff]
    %v223 = vld [vmem:[#allocation10 + $0x18] sm:$0xff]
    %v224 = vld [vmem:[#allocation10 + $0x20] sm:$0xff]
    %v225 = vld [vmem:[#allocation10 + $0x28] sm:$0xff]
    %v226 = vld [vmem:[#allocation10 + $0x30] sm:$0xff]
    %v227 = vld [vmem:[#allocation10 + $0x38] sm:$0xff]
    %v228 = vld [vmem:[#allocation10 + $0x40] sm:$0xff]
    %v229 = vld [vmem:[#allocation10 + $0x48] sm:$0xff]
    %v230 = vld [vmem:[#allocation10 + $0x50] sm:$0xff]
    %v231 = vld [vmem:[#allocation10 + $0x58] sm:$0xff]
    %v232 = vld [vmem:[#allocation10 + $0x60] sm:$0xff]
    %v233 = vld [vmem:[#allocation10 + $0x68] sm:$0xff]
    %v234 = vld [vmem:[#allocation10 + $0x70] sm:$0xff]
    %v235 = vld [vmem:[#allocation10 + $0x78] sm:$0xff]
    %v236 = vld [vmem:[%s7] sm:$0x1]
    %v238 = vperm.slane %v236, 0
    %240 = vmatpush.msra.mxu0 %v235
    %241 = vmatpush.msra.mxu0 %v234
    %242 = vmatpush.msra.mxu0 %v233
    %243 = vmatpush.msra.mxu0 %v232
    %244 = vmatpush.msra.mxu0 %v231
    %245 = vmatpush.msra.mxu0 %v230
    %246 = vmatpush.msra.mxu0 %v229
    %247 = vmatpush.msra.mxu0 %v228
    %248 = vmatpush.msra.mxu0 %v227
    %249 = vmatpush.msra.mxu0 %v226
    %250 = vmatpush.msra.mxu0 %v225
    %251 = vmatpush.msra.mxu0 %v224
    %252 = vmatpush.msra.mxu0 %v223
    %253 = vmatpush.msra.mxu0 %v222
    %254 = vmatpush.msra.mxu0 %v221
    %255 = vmatpush.msra.mxu0 %v220
    %256 = vmatmul.f32.gmra.mxu0 %v132
    %v257 = vpop.f32.mrf.mxu0
    %v258 = vadd.f32 %v238, %v257
    %259 = vmatmul.f32.gmra.mxu0 %v133
    %v260 = vpop.f32.mrf.mxu0
    %v261 = vadd.f32 %v238, %v260
    %262 = vdwg.mxu0
    %263 = vmatpush.xpose.msra.mxu0 0.0
    %264 = vmatpush.xpose.msra.mxu0 0.0
    %265 = vmatpush.xpose.msra.mxu0 0.0
    %266 = vmatpush.xpose.msra.mxu0 0.0
    %267 = vmatpush.xpose.msra.mxu0 0.0
    %268 = vmatpush.xpose.msra.mxu0 0.0
    %269 = vmatpush.xpose.msra.mxu0 0.0
    %270 = vmatpush.xpose.msra.mxu0 0.0
    %271 = vmatpush.xpose.msra.mxu0 0.0
    %272 = vmatpush.xpose.msra.mxu0 0.0
    %273 = vmatpush.xpose.msra.mxu0 0.0
    %274 = vmatpush.xpose.msra.mxu0 0.0
    %275 = vmatpush.xpose.msra.mxu0 0.0
    %276 = vmatpush.xpose.msra.mxu0 0.0
    %277 = vmatpush.xpose.msra.mxu0 0.0
    %278 = vmatpush.xpose.msra.mxu0 %v215
    %279 = vmatmul.f32.gmra.mxu0 %v172
    %v280 = vpop.f32.mrf.mxu0
    %v281 = vadd.f32 0.0, %v280
    %282 = vdwg.mxu0
    %283 = vmatpush.xpose.msra.mxu0 0.0
    %284 = vmatpush.xpose.msra.mxu0 0.0
    %285 = vmatpush.xpose.msra.mxu0 0.0
    %286 = vmatpush.xpose.msra.mxu0 0.0
    %287 = vmatpush.xpose.msra.mxu0 0.0
    %288 = vmatpush.xpose.msra.mxu0 0.0
    %289 = vmatpush.xpose.msra.mxu0 0.0
    %290 = vmatpush.xpose.msra.mxu0 0.0
    %291 = vmatpush.xpose.msra.mxu0 0.0
    %292 = vmatpush.xpose.msra.mxu0 0.0
    %293 = vmatpush.xpose.msra.mxu0 0.0
    %294 = vmatpush.xpose.msra.mxu0 0.0
    %295 = vmatpush.xpose.msra.mxu0 0.0
    %296 = vmatpush.xpose.msra.mxu0 0.0
    %297 = vmatpush.xpose.msra.mxu0 0.0
    %298 = vmatpush.xpose.msra.mxu0 %v218
    %299 = vmatmul.f32.gmra.mxu0 %v175
    %v300 = vpop.f32.mrf.mxu0
    %v301 = vadd.f32 0.0, %v300
    %302 = vdwg.mxu0
    %vm303 = vcmask 64512
    %v304 = vsel %vm303, %v281, -inf
    %305 = vmax.xlane.f32.xlu0 %v304
    %v306 = vpop.xlane.xlu0 %305
    %v307 = vsel %vm303, %v301, -inf
    %308 = vmax.xlane.f32.xlu0 %v307
    %v309 = vpop.xlane.xlu0 %308
    %v310 = vsub.f32 %v281, %v306
    %v311 = vsub.f32 %v301, %v309
    %v312 = vmul.f32 %v310, 1.442695
    %v313 = vpow.pop %v312
    %v314 = vmul.f32 %v311, 1.442695
    %v315 = vpow.pop %v314
    %v316 = vsel %vm303, %v313, 0.0
    %317 = vadd.xlane.f32.xlu0 %v316
    %v318 = vpop.xlane.xlu0 %317
    %v319 = vsel %vm303, %v315, 0.0
    %320 = vadd.xlane.f32.xlu0 %v319
    %v321 = vpop.xlane.xlu0 %320
    %v322 = vrcp.pop %v318
    %v323 = vmul.f32 %v318, %v322
    %v324 = vsub.f32 1.0, %v323
    %v325 = vmul.f32 %v322, %v324
    %v326 = vadd.f32 %v322, %v325
    %vm327 = vweird.f32 %v318
    %vm328 = vweird.f32 %v322
    %vm329 = vmor %vm327, %vm328
    %v330 = vsel %vm329, %v322, %v326
    %v331 = vand.u32 2147483647, %v318
    %vm332 = vcmp.eq.f32.partialorder %v331, 8.507059e+37
    %v333 = vand.u32 %v318, 2147483648
    %v334 = vor.u32 1.1754944e-38, %v333
    %v335 = vsel %vm332, %v334, %v330
    %v336 = vmul.f32 %v313, %v335
    %v337 = vrcp.pop %v321
    %v338 = vmul.f32 %v321, %v337
    %v339 = vsub.f32 1.0, %v338
    %v340 = vmul.f32 %v337, %v339
    %v341 = vadd.f32 %v337, %v340
    %vm342 = vweird.f32 %v321
    %vm343 = vweird.f32 %v337
    %vm344 = vmor %vm342, %vm343
    %v345 = vsel %vm344, %v337, %v341
    %v346 = vand.u32 2147483647, %v321
    %vm347 = vcmp.eq.f32.partialorder %v346, 8.507059e+37
    %v348 = vand.u32 %v321, 2147483648
    %v349 = vor.u32 1.1754944e-38, %v348
    %v350 = vsel %vm347, %v349, %v345
    %v351 = vmul.f32 %v315, %v350
    %v353 = vsel %vm303, %v336, 0
    %355 = vmatpush.msra.mxu0 0.0
    %356 = vmatpush.msra.mxu0 0.0
    %357 = vmatpush.msra.mxu0 0.0
    %358 = vmatpush.msra.mxu0 0.0
    %359 = vmatpush.msra.mxu0 0.0
    %360 = vmatpush.msra.mxu0 0.0
    %361 = vmatpush.msra.mxu0 0.0
    %362 = vmatpush.msra.mxu0 0.0
    %363 = vmatpush.msra.mxu0 0.0
    %364 = vmatpush.msra.mxu0 0.0
    %365 = vmatpush.msra.mxu0 0.0
    %366 = vmatpush.msra.mxu0 0.0
    %367 = vmatpush.msra.mxu0 0.0
    %368 = vmatpush.msra.mxu0 0.0
    %369 = vmatpush.msra.mxu0 0.0
    %370 = vmatpush.msra.mxu0 %v258
    %371 = vmatmul.f32.gmra.mxu0 %v353
    %v372 = vpop.f32.mrf.mxu0
    %v373 = vadd.f32 0.0, %v372
    %374 = vdwg.mxu0
    %v376 = vsel %vm303, %v351, 0
    %378 = vmatpush.msra.mxu0 0.0
    %379 = vmatpush.msra.mxu0 0.0
    %380 = vmatpush.msra.mxu0 0.0
    %381 = vmatpush.msra.mxu0 0.0
    %382 = vmatpush.msra.mxu0 0.0
    %383 = vmatpush.msra.mxu0 0.0
    %384 = vmatpush.msra.mxu0 0.0
    %385 = vmatpush.msra.mxu0 0.0
    %386 = vmatpush.msra.mxu0 0.0
    %387 = vmatpush.msra.mxu0 0.0
    %388 = vmatpush.msra.mxu0 0.0
    %389 = vmatpush.msra.mxu0 0.0
    %390 = vmatpush.msra.mxu0 0.0
    %391 = vmatpush.msra.mxu0 0.0
    %392 = vmatpush.msra.mxu0 0.0
    %393 = vmatpush.msra.mxu0 %v261
    %394 = vmatmul.f32.gmra.mxu0 %v376
    %v395 = vpop.f32.mrf.mxu0
    %v396 = vadd.f32 0.0, %v395
    %397 = vdwg.mxu0
    %v398 = vld [vmem:[#allocation11] sm:$0xff]
    %v399 = vld [vmem:[#allocation11 + $0x8] sm:$0xff]
    %v400 = vld [vmem:[#allocation11 + $0x10] sm:$0xff]
    %v401 = vld [vmem:[#allocation11 + $0x18] sm:$0xff]
    %v402 = vld [vmem:[#allocation11 + $0x20] sm:$0xff]
    %v403 = vld [vmem:[#allocation11 + $0x28] sm:$0xff]
    %v404 = vld [vmem:[#allocation11 + $0x30] sm:$0xff]
    %v405 = vld [vmem:[#allocation11 + $0x38] sm:$0xff]
    %v406 = vld [vmem:[#allocation11 + $0x40] sm:$0xff]
    %v407 = vld [vmem:[#allocation11 + $0x48] sm:$0xff]
    %v408 = vld [vmem:[#allocation11 + $0x50] sm:$0xff]
    %v409 = vld [vmem:[#allocation11 + $0x58] sm:$0xff]
    %v410 = vld [vmem:[#allocation11 + $0x60] sm:$0xff]
    %v411 = vld [vmem:[#allocation11 + $0x68] sm:$0xff]
    %v412 = vld [vmem:[#allocation11 + $0x70] sm:$0xff]
    %v413 = vld [vmem:[#allocation11 + $0x78] sm:$0xff]
    %v414 = vld [vmem:[%s9] sm:$0x1]
    %v416 = vperm.slane %v414, 0
    %418 = vmatpush.msra.mxu0 %v413
    %419 = vmatpush.msra.mxu0 %v412
    %420 = vmatpush.msra.mxu0 %v411
    %421 = vmatpush.msra.mxu0 %v410
    %422 = vmatpush.msra.mxu0 %v409
    %423 = vmatpush.msra.mxu0 %v408
    %424 = vmatpush.msra.mxu0 %v407
    %425 = vmatpush.msra.mxu0 %v406
    %426 = vmatpush.msra.mxu0 %v405
    %427 = vmatpush.msra.mxu0 %v404
    %428 = vmatpush.msra.mxu0 %v403
    %429 = vmatpush.msra.mxu0 %v402
    %430 = vmatpush.msra.mxu0 %v401
    %431 = vmatpush.msra.mxu0 %v400
    %432 = vmatpush.msra.mxu0 %v399
    %433 = vmatpush.msra.mxu0 %v398
    %434 = vmatmul.f32.gmra.mxu0 %v373
    %v435 = vpop.f32.mrf.mxu0
    %v436 = vadd.f32 %v416, %v435
    %437 = vmatmul.f32.gmra.mxu0 %v396
    %v438 = vpop.f32.mrf.mxu0
    %v439 = vadd.f32 %v416, %v438
    %440 = vdwg.mxu0
    %441 = vst [vmem:[#allocation13] sm:$0xff] %v436
    %442 = vst [vmem:[#allocation13 + $0x8] sm:$0xff] %v439
    // Predicated region
    $region66: #{tpu_custom_call.1} parent=1 // pred_check
      _
    $region67: #{tpu_custom_call.1} parent=1 // pred_check_branch
      %444 = sbr.rel (0) target = $region69
    $region68: #{tpu_custom_call.1} parent=1 // pred_region
      %446 = vsyncadd [#allocation4], 0
      %s447 = sshll.u32 [#allocation13], 4
      %s448 = int_to_ptr.vmem [resolvable:$true] %s447
      %s449 = sshll.u32 %s10, 4
      %s450 = int_to_ptr.hbm [resolvable:$true] %s449
      %455 = dma.vmem_to_hbm [thread:$0]  %s448, 256, %s450, [#allocation4], 128, 128, 8
    $region69: #{tpu_custom_call.1} parent=1 // pred_fallthru
      _
    // Predicated region
    $region70: #{tpu_custom_call.1} parent=1 // pred_check
      _
    $region71: #{tpu_custom_call.1} parent=1 // pred_check_branch
      %457 = sbr.rel (0) target = $region73
    $region72: #{tpu_custom_call.1} parent=1 // pred_region
      %459 = dma.done [#allocation4], 256
    $region73: #{tpu_custom_call.1} parent=1 // pred_fallthru
      _
    %460 = vsyncpa [#allocation3], 1
    %461 = vsyncpa [#allocation6], 1
    %462 = vsyncpa [#allocation9], 1
    %463 = vsyncpa [#allocation12], 1
    %464 = vsyncpa [#allocation4], 1

</llo_original>
